<compile_context>
chip_gen: v6e
topology: v6e:2x2x1
jax: 0.10.0
libtpu: 0.0.40
codegen_flags: <defaults>
</compile_context>

<pallas_src>
import functools
import math

import jax
import jax.numpy as jnp
from jax.experimental import pallas as pl
from jax.experimental.pallas import tpu as pltpu

_TWO_PI = 2.0 * math.pi


def _round_up(x, m):
    return ((x + m - 1) // m) * m


def _layer_layout(d_in, n_stk):
    """Row layout of the packed 3-layer weight slab (8-aligned block starts)."""
    k1 = 4 * d_in + 4            # layer-1 stacked rows: 4*Din weights + 4 bias rows
    k2 = 4 * n_stk + 4           # layers 2/3 (inputs padded to n_stk)
    r2 = _round_up(k1, 8)
    r3 = _round_up(r2 + k2, 8)
    r_tot = _round_up(r3 + k2, 8)
    return k1, k2, r2, r3, r_tot


# ---------------------------------------------------------------------------
# Parameter preparation (done ONCE, outside the kernel)
# ---------------------------------------------------------------------------
def prepare_params(params, dtype=jnp.float32, head_pad=128):
    """Pack weights for the fused-contraction kernel.

      wstk : (R, n_stk)  -- for each layer, rows [W0; W1; W2; W3; B] (bias folded into
                            the contraction), inputs/outputs zero-padded to n_stk,
                            the three layer blocks stacked at 8-aligned row offsets.
      whead: (n_stk, P)  -- [Wmu | Wls] lane-padded to P (multiple of 128).
      bhead: (1, P)      -- [bmu | bls] lane-padded.
    """
    w1, b1 = params["w1"], params["b1"]          # (4, Din, H1), (4, H1)
    w2, b2 = params["w2"], params["b2"]          # (4, H1, H2), (4, H2)
    w3, b3 = params["w3"], params["b3"]          # (4, H2, Dout), (4, Dout)
    wmu, bmu = params["wmu"], params["bmu"]      # (Dout, A), (1, A)
    wls, bls = params["wls"], params["bls"]

    d_in, h1 = w1.shape[1], w1.shape[2]
    h2, d_out = w2.shape[2], w3.shape[2]
    n_act = wmu.shape[1]
    n_stk = max(h1, h2, d_out)
    k1, k2, r2, r3, r_tot = _layer_layout(d_in, n_stk)

    def stack(w, b, k_in):
        four, kr, nr = w.shape
        wp = jnp.pad(w, ((0, 0), (0, k_in - kr), (0, n_stk - nr)))
        bp_ = jnp.pad(b, ((0, 0), (0, n_stk - nr)))
        # row index = net*k_in + d  <->  LHS column index of [wc0*a | ... | wc3*a]
        return jnp.concatenate([wp.reshape(4 * k_in, n_stk), bp_], axis=0)

    wstk = jnp.zeros((r_tot, n_stk), jnp.float32)
    wstk = wstk.at[0:k1].set(stack(w1, b1, d_in))
    wstk = wstk.at[r2:r2 + k2].set(stack(w2, b2, n_stk))
    wstk = wstk.at[r3:r3 + k2].set(stack(w3, b3, n_stk))

    two_a = 2 * n_act
    hp = max(head_pad, _round_up(two_a, 128))
    whead = jnp.zeros((n_stk, hp), jnp.float32)
    whead = whead.at[:d_out, :n_act].set(wmu)
    whead = whead.at[:d_out, n_act:two_a].set(wls)
    bhead = jnp.zeros((1, hp), jnp.float32)
    bhead = bhead.at[:, :n_act].set(bmu)
    bhead = bhead.at[:, n_act:two_a].set(bls)

    return {"wstk": wstk.astype(dtype),
            "whead": whead.astype(dtype),
            "bhead": bhead.astype(jnp.float32)}


# ---------------------------------------------------------------------------
# Pallas kernel: 3 blended layers (blend + bias folded into the matmul) + head
# ---------------------------------------------------------------------------
def pmlp_actor_kernel(phase_ref, x_ref, wstk_ref, wh_ref, bh_ref, head_ref, *, n_act):
    f32 = jnp.float32
    tb, d_in = x_ref.shape
    n_stk = wstk_ref.shape[1]
    k1, k2, r2, r3, _ = _layer_layout(d_in, n_stk)
    cdt = wstk_ref.dtype

    # ---- Catmull-Rom blend coefficients from phase (VPU, integer quadrant) -------
    ph = phase_ref[...].astype(f32)                      # (TB, 1)
    p = ph * (4.0 / _TWO_PI)
    pf = jnp.floor(p)
    w = p - pf                                           # spline_w(phase) in [0, 1)
    q = pf.astype(jnp.int32)                             # quadrant index
    w2 = w * w
    w3 = w2 * w
    cj = (-0.5 * w + w2 - 0.5 * w3,                      # weight of net kn(phase, 0)
          1.0 - 2.5 * w2 + 1.5 * w3,                     # weight of net kn(phase, 1)
          0.5 * w + 2.0 * w2 - 1.5 * w3,                 # weight of net kn(phase, 2)
          -0.5 * w2 + 0.5 * w3)                          # weight of net kn(phase, 3)
    cols = []
    for i in range(4):                                   # wc[:, i] = sum_j cj[j]*[kn_j==i]
        acc = jnp.zeros_like(w)
        for j in range(4):
            knj = q + (j - 1)                            # kn(phase, j) before wrap
            knj = jnp.where(knj < 0, knj + 4, knj)
            knj = jnp.where(knj >= 4, knj - 4, knj)
            acc = acc + jnp.where(knj == i, cj[j], 0.0)
        cols.append(acc)                                 # (TB, 1) f32
    wc4 = jnp.concatenate(cols, axis=-1)                 # (TB, 4)

    # Hoisted lane-broadcasts of the coefficients, reused by layers 2 and 3.
    colw = [jnp.broadcast_to(c, (tb, n_stk)) for c in cols]

    def blended_layer(pieces, row0, k_in):
        # [wc0*a | wc1*a | wc2*a | wc3*a | wc] @ [W0; W1; W2; W3; B]  (bias folded in)
        lhs = jnp.concatenate(pieces + [wc4], axis=-1).astype(cdt)   # (TB, 4*k_in+4)
        rhs = wstk_ref[row0:row0 + 4 * k_in + 4, :]
        return jnp.dot(lhs, rhs, preferred_element_type=f32)

    x = x_ref[...].astype(f32)
    h = jnp.maximum(blended_layer([c * x for c in cols], 0, d_in), 0.0)
    h = jnp.maximum(blended_layer([cw * h for cw in colw], r2, n_stk), 0.0)
    o = jnp.maximum(blended_layer([cw * h for cw in colw], r3, n_stk), 0.0)

    # Fused mu / log_sigma head, lane-padded to 128 -> unmasked 128-lane store.
    head = jnp.dot(o.astype(cdt), wh_ref[...], preferred_element_type=f32) + bh_ref[...]
    lane = jax.lax.broadcasted_iota(jnp.int32, head.shape, 1)
    is_ls = (lane >= n_act) & (lane < 2 * n_act)
    head_ref[...] = jnp.where(is_ls, jnp.clip(head, -20.0, 10.0), head)


# ---------------------------------------------------------------------------
# Wrapper: 1-D batch grid, packed weights resident in VMEM across grid steps
# ---------------------------------------------------------------------------
def _choose_tile(b, block_b):
    """Batch tile: as big as block_b allows, but keep >=2 grid steps when bp >= 16
    so both v7x TensorCores get work; always a multiple of 8 sublanes."""
    bp8 = _round_up(max(int(b), 1), 8)
    cap = max(8, _round_up(int(block_b), 8))
    if bp8 >= 16:
        half = _round_up((bp8 + 1) // 2, 8)
        tb = min(cap, half)
    else:
        tb = bp8
    bp = _round_up(bp8, tb)
    return tb, bp


def pmlp_actor_forward(x, phase, prep, n_actions, *, block_b=2048):
    """Returns (mu, log_sigma) exactly like PMLPActor.forward (n_layers=2)."""
    b, d_in = x.shape
    wstk, whead, bhead = prep["wstk"], prep["whead"], prep["bhead"]
    n_stk = wstk.shape[1]
    head_w = whead.shape[1]
    assert _layer_layout(d_in, n_stk)[4] == wstk.shape[0], "prep / input mismatch"
    assert head_w >= 2 * n_actions

    tb, bp = _choose_tile(b, block_b)
    if bp != b:
        x = jnp.pad(x, ((0, bp - b), (0, 0)))
        phase = jnp.pad(phase, ((0, bp - b), (0, 0)))
    x = x.astype(jnp.float32)
    phase = phase.astype(jnp.float32)

    def resident(arr):  # full-array block, same block every grid step -> stays in VMEM
        return pl.BlockSpec(arr.shape, lambda i: (0,) * arr.ndim)

    head = pl.pallas_call(
        functools.partial(pmlp_actor_kernel, n_act=n_actions),
        out_shape=jax.ShapeDtypeStruct((bp, head_w), jnp.float32),
        grid=(bp // tb,),
        in_specs=[
            pl.BlockSpec((tb, 1), lambda i: (i, 0)),        # phase (streamed)
            pl.BlockSpec((tb, d_in), lambda i: (i, 0)),     # x     (streamed)
            resident(wstk), resident(whead), resident(bhead),
        ],
        out_specs=pl.BlockSpec((tb, head_w), lambda i: (i, 0)),
        compiler_params=pltpu.CompilerParams(
            dimension_semantics=("parallel",),              # both TCs on v7x
            # footprint ~8-10 MiB at tb=2048; 32 MiB documents headroom and is safe
            # on every generation (v7x has 64 MiB/TC).
            vmem_limit_bytes=32 * 1024 * 1024,
        ),
    )(phase, x, wstk, whead, bhead)

    return head[:b, :n_actions], head[:b, n_actions:2 * n_actions]


# ---------------------------------------------------------------------------
# Pure-JAX reference (full f32, HIGHEST precision) for correctness checks
# ---------------------------------------------------------------------------
def compute_blend_coeffs(phase):
    p = 4.0 * phase / _TWO_PI
    pf = jnp.floor(p)
    w = p - pf
    q = pf.astype(jnp.int32)
    w2 = w * w
    w3 = w2 * w
    cj = jnp.concatenate([-0.5 * w + w2 - 0.5 * w3,
                          1.0 - 2.5 * w2 + 1.5 * w3,
                          0.5 * w + 2.0 * w2 - 1.5 * w3,
                          -0.5 * w2 + 0.5 * w3], axis=-1)          # (B, 4) j-order
    kn = jnp.mod(q + jnp.arange(4)[None, :] - 1, 4)                # (B, 4)
    onehot = (kn[:, :, None] == jnp.arange(4)[None, None, :]).astype(cj.dtype)
    return jnp.sum(cj[:, :, None] * onehot, axis=1)                # (B, 4) net-order


def pmlp_actor_ref(x, phase, params):
    wc = compute_blend_coeffs(phase).astype(jnp.float32)
    hp = jax.lax.Precision.HIGHEST

    def dot(a, w):
        return jnp.dot(a, w, precision=hp, preferred_element_type=jnp.float32)

    def blended(a, w_stk, b_stk):
        h = jnp.zeros((a.shape[0], w_stk.shape[-1]), jnp.float32)
        for k in range(4):
            h = h + wc[:, k:k + 1] * (dot(a, w_stk[k]) + b_stk[k])
        return h

    h0 = jax.nn.relu(blended(x, params["w1"], params["b1"]))
    h1 = jax.nn.relu(blended(h0, params["w2"], params["b2"]))
    o = jax.nn.relu(blended(h1, params["w3"], params["b3"]))
    mu = dot(o, params["wmu"]) + params["bmu"]
    ls = jnp.clip(dot(o, params["wls"]) + params["bls"], -20.0, 10.0)
    return mu, ls


# ---------------------------------------------------------------------------
# Deterministic parameter construction (shapes from PMLPActor.__init__)
# ---------------------------------------------------------------------------
def init_params(key, input_size, h1, h2, output_size, n_actions):
    ks = jax.random.split(key, 10)

    def fanin_uniform(k, shape, fan_in):
        bound = 1.0 / math.sqrt(fan_in)
        return jax.random.uniform(k, shape, jnp.float32, -bound, bound)

    return {
        "w1": fanin_uniform(ks[0], (4, input_size, h1), input_size),
        "b1": fanin_uniform(ks[1], (4, h1), input_size),
        "w2": fanin_uniform(ks[2], (4, h1, h2), h1),
        "b2": fanin_uniform(ks[3], (4, h2), h1),
        "w3": jax.random.uniform(ks[4], (4, h2, output_size), jnp.float32, -0.003, 0.003),
        "b3": jax.random.uniform(ks[5], (4, output_size), jnp.float32, -0.003, 0.003),
        "wmu": fanin_uniform(ks[6], (output_size, n_actions), output_size),
        "bmu": fanin_uniform(ks[7], (1, n_actions), output_size),
        "wls": fanin_uniform(ks[8], (output_size, n_actions), output_size),
        "bls": fanin_uniform(ks[9], (1, n_actions), output_size),
    }


if __name__ == "__main__":
    batch = 4
    input_size = 16
    hidden = (32, 32)
    output_size = 16
    n_actions = 8

    key = jax.random.PRNGKey(0)
    k_params, k_x, k_phase, k_x2, k_phase2 = jax.random.split(key, 5)

    params = init_params(k_params, input_size, hidden[0], hidden[1],
                         output_size, n_actions)
    prep = prepare_params(params)

    x = jax.random.normal(k_x, (batch, input_size), jnp.float32)
    phase = jax.random.uniform(k_phase, (batch, 1), jnp.float32, 0.0, _TWO_PI)

    fwd = jax.jit(functools.partial(pmlp_actor_forward, n_actions=n_actions))
    mu, log_sigma = fwd(x, phase, prep)
    jax.block_until_ready((mu, log_sigma))

    assert mu.shape == (batch, n_actions)
    assert log_sigma.shape == (batch, n_actions)

    mu_ref, ls_ref = pmlp_actor_ref(x, phase, params)
    assert jnp.allclose(mu, mu_ref, atol=2e-3, rtol=2e-3)
    assert jnp.allclose(log_sigma, ls_ref, atol=2e-3, rtol=2e-3)

    # Second call exercising the multi-step batch grid + batch-padding path.
    b2 = 200
    x2 = jax.random.normal(k_x2, (b2, input_size), jnp.float32)
    phase2 = jax.random.uniform(k_phase2, (b2, 1), jnp.float32, 0.0, _TWO_PI)
    mu2, ls2 = pmlp_actor_forward(x2, phase2, prep, n_actions, block_b=64)
    jax.block_until_ready((mu2, ls2))
    mu2_ref, ls2_ref = pmlp_actor_ref(x2, phase2, params)
    assert jnp.allclose(mu2, mu2_ref, atol=2e-3, rtol=2e-3)
    assert jnp.allclose(ls2, ls2_ref, atol=2e-3, rtol=2e-3)

    print("KERNEL_OK")
</pallas_src>

<mosaic_0001>
module attributes {stable_mosaic.version = 11 : i64} {
  func.func @pmlp_actor_kernel(%arg0: i32, %arg1: memref<8x1xf32, #tpu.memory_space<vmem>>, %arg2: memref<8x16xf32, #tpu.memory_space<vmem>>, %arg3: memref<344x32xf32, #tpu.memory_space<vmem>>, %arg4: memref<32x128xf32, #tpu.memory_space<vmem>>, %arg5: memref<1x128xf32, #tpu.memory_space<vmem>>, %arg6: memref<8x128xf32, #tpu.memory_space<vmem>>) attributes {dimension_semantics = [#tpu.dimension_semantics<parallel>], iteration_bounds = array<i64: 1>, scalar_prefetch = 0 : i64, scratch_operands = 0 : i64, tpu.core_type = #tpu.core_type<tc>, window_params = [{transform_indices = @transform_0, window_bounds = array<i64: 8, 1>}, {transform_indices = @transform_1, window_bounds = array<i64: 8, 16>}, {pipeline_mode = #tpu.pipeline_mode<synchronous>, transform_indices = @transform_2, window_bounds = array<i64: 344, 32>}, {pipeline_mode = #tpu.pipeline_mode<synchronous>, transform_indices = @transform_3, window_bounds = array<i64: 32, 128>}, {pipeline_mode = #tpu.pipeline_mode<synchronous>, transform_indices = @transform_4, window_bounds = array<i64: 1, 128>}, {transform_indices = @transform_5, window_bounds = array<i64: 8, 128>}]} {
    %c0 = arith.constant 0 : index
    %c0_0 = arith.constant 0 : index
    %0 = vector.load %arg1[%c0, %c0_0] : memref<8x1xf32, #tpu.memory_space<vmem>>, vector<8x1xf32>
    %cst = arith.constant 0.636619746 : f32
    %1 = vector.broadcast %cst : f32 to vector<8x1xf32>
    %2 = arith.mulf %0, %1 : vector<8x1xf32>
    %3 = math.floor %2 : vector<8x1xf32>
    %4 = arith.subf %2, %3 : vector<8x1xf32>
    %5 = arith.fptosi %3 : vector<8x1xf32> to vector<8x1xi32>
    %6 = arith.mulf %4, %4 : vector<8x1xf32>
    %7 = arith.mulf %6, %4 : vector<8x1xf32>
    %cst_1 = arith.constant -5.000000e-01 : f32
    %8 = vector.broadcast %cst_1 : f32 to vector<8x1xf32>
    %9 = arith.mulf %8, %4 : vector<8x1xf32>
    %10 = arith.addf %9, %6 : vector<8x1xf32>
    %cst_2 = arith.constant 5.000000e-01 : f32
    %11 = vector.broadcast %cst_2 : f32 to vector<8x1xf32>
    %12 = arith.mulf %11, %7 : vector<8x1xf32>
    %13 = arith.subf %10, %12 : vector<8x1xf32>
    %cst_3 = arith.constant 2.500000e+00 : f32
    %14 = vector.broadcast %cst_3 : f32 to vector<8x1xf32>
    %15 = arith.mulf %14, %6 : vector<8x1xf32>
    %cst_4 = arith.constant 1.000000e+00 : f32
    %16 = vector.broadcast %cst_4 : f32 to vector<8x1xf32>
    %17 = arith.subf %16, %15 : vector<8x1xf32>
    %cst_5 = arith.constant 1.500000e+00 : f32
    %18 = vector.broadcast %cst_5 : f32 to vector<8x1xf32>
    %19 = arith.mulf %18, %7 : vector<8x1xf32>
    %20 = arith.addf %17, %19 : vector<8x1xf32>
    %cst_6 = arith.constant 5.000000e-01 : f32
    %21 = vector.broadcast %cst_6 : f32 to vector<8x1xf32>
    %22 = arith.mulf %21, %4 : vector<8x1xf32>
    %cst_7 = arith.constant 2.000000e+00 : f32
    %23 = vector.broadcast %cst_7 : f32 to vector<8x1xf32>
    %24 = arith.mulf %23, %6 : vector<8x1xf32>
    %25 = arith.addf %22, %24 : vector<8x1xf32>
    %cst_8 = arith.constant 1.500000e+00 : f32
    %26 = vector.broadcast %cst_8 : f32 to vector<8x1xf32>
    %27 = arith.mulf %26, %7 : vector<8x1xf32>
    %28 = arith.subf %25, %27 : vector<8x1xf32>
    %cst_9 = arith.constant -5.000000e-01 : f32
    %29 = vector.broadcast %cst_9 : f32 to vector<8x1xf32>
    %30 = arith.mulf %29, %6 : vector<8x1xf32>
    %cst_10 = arith.constant 5.000000e-01 : f32
    %31 = vector.broadcast %cst_10 : f32 to vector<8x1xf32>
    %32 = arith.mulf %31, %7 : vector<8x1xf32>
    %33 = arith.addf %30, %32 : vector<8x1xf32>
    %cst_11 = arith.constant 0.000000e+00 : f32
    %34 = vector.broadcast %cst_11 : f32 to vector<8x1xf32>
    %c-1_i32 = arith.constant -1 : i32
    %35 = vector.broadcast %c-1_i32 : i32 to vector<8x1xi32>
    %36 = arith.addi %5, %35 : vector<8x1xi32>
    %c0_i32 = arith.constant 0 : i32
    %37 = vector.broadcast %c0_i32 : i32 to vector<8x1xi32>
    %38 = arith.cmpi slt, %36, %37 : vector<8x1xi32>
    %c4_i32 = arith.constant 4 : i32
    %39 = vector.broadcast %c4_i32 : i32 to vector<8x1xi32>
    %40 = arith.addi %36, %39 : vector<8x1xi32>
    %41 = arith.select %38, %40, %36 : vector<8x1xi1>, vector<8x1xi32>
    %c4_i32_12 = arith.constant 4 : i32
    %42 = vector.broadcast %c4_i32_12 : i32 to vector<8x1xi32>
    %43 = arith.cmpi sge, %41, %42 : vector<8x1xi32>
    %c4_i32_13 = arith.constant 4 : i32
    %44 = vector.broadcast %c4_i32_13 : i32 to vector<8x1xi32>
    %45 = arith.subi %41, %44 : vector<8x1xi32>
    %46 = arith.select %43, %45, %41 : vector<8x1xi1>, vector<8x1xi32>
    %c0_i32_14 = arith.constant 0 : i32
    %47 = vector.broadcast %c0_i32_14 : i32 to vector<8x1xi32>
    %48 = arith.cmpi eq, %46, %47 : vector<8x1xi32>
    %cst_15 = arith.constant 0.000000e+00 : f32
    %49 = vector.broadcast %cst_15 : f32 to vector<8x1xf32>
    %50 = arith.select %48, %13, %49 : vector<8x1xi1>, vector<8x1xf32>
    %51 = arith.addf %34, %50 : vector<8x1xf32>
    %c0_i32_16 = arith.constant 0 : i32
    %52 = vector.broadcast %c0_i32_16 : i32 to vector<8x1xi32>
    %53 = arith.addi %5, %52 : vector<8x1xi32>
    %c0_i32_17 = arith.constant 0 : i32
    %54 = vector.broadcast %c0_i32_17 : i32 to vector<8x1xi32>
    %55 = arith.cmpi slt, %53, %54 : vector<8x1xi32>
    %c4_i32_18 = arith.constant 4 : i32
    %56 = vector.broadcast %c4_i32_18 : i32 to vector<8x1xi32>
    %57 = arith.addi %53, %56 : vector<8x1xi32>
    %58 = arith.select %55, %57, %53 : vector<8x1xi1>, vector<8x1xi32>
    %c4_i32_19 = arith.constant 4 : i32
    %59 = vector.broadcast %c4_i32_19 : i32 to vector<8x1xi32>
    %60 = arith.cmpi sge, %58, %59 : vector<8x1xi32>
    %c4_i32_20 = arith.constant 4 : i32
    %61 = vector.broadcast %c4_i32_20 : i32 to vector<8x1xi32>
    %62 = arith.subi %58, %61 : vector<8x1xi32>
    %63 = arith.select %60, %62, %58 : vector<8x1xi1>, vector<8x1xi32>
    %c0_i32_21 = arith.constant 0 : i32
    %64 = vector.broadcast %c0_i32_21 : i32 to vector<8x1xi32>
    %65 = arith.cmpi eq, %63, %64 : vector<8x1xi32>
    %cst_22 = arith.constant 0.000000e+00 : f32
    %66 = vector.broadcast %cst_22 : f32 to vector<8x1xf32>
    %67 = arith.select %65, %20, %66 : vector<8x1xi1>, vector<8x1xf32>
    %68 = arith.addf %51, %67 : vector<8x1xf32>
    %c1_i32 = arith.constant 1 : i32
    %69 = vector.broadcast %c1_i32 : i32 to vector<8x1xi32>
    %70 = arith.addi %5, %69 : vector<8x1xi32>
    %c0_i32_23 = arith.constant 0 : i32
    %71 = vector.broadcast %c0_i32_23 : i32 to vector<8x1xi32>
    %72 = arith.cmpi slt, %70, %71 : vector<8x1xi32>
    %c4_i32_24 = arith.constant 4 : i32
    %73 = vector.broadcast %c4_i32_24 : i32 to vector<8x1xi32>
    %74 = arith.addi %70, %73 : vector<8x1xi32>
    %75 = arith.select %72, %74, %70 : vector<8x1xi1>, vector<8x1xi32>
    %c4_i32_25 = arith.constant 4 : i32
    %76 = vector.broadcast %c4_i32_25 : i32 to vector<8x1xi32>
    %77 = arith.cmpi sge, %75, %76 : vector<8x1xi32>
    %c4_i32_26 = arith.constant 4 : i32
    %78 = vector.broadcast %c4_i32_26 : i32 to vector<8x1xi32>
    %79 = arith.subi %75, %78 : vector<8x1xi32>
    %80 = arith.select %77, %79, %75 : vector<8x1xi1>, vector<8x1xi32>
    %c0_i32_27 = arith.constant 0 : i32
    %81 = vector.broadcast %c0_i32_27 : i32 to vector<8x1xi32>
    %82 = arith.cmpi eq, %80, %81 : vector<8x1xi32>
    %cst_28 = arith.constant 0.000000e+00 : f32
    %83 = vector.broadcast %cst_28 : f32 to vector<8x1xf32>
    %84 = arith.select %82, %28, %83 : vector<8x1xi1>, vector<8x1xf32>
    %85 = arith.addf %68, %84 : vector<8x1xf32>
    %c2_i32 = arith.constant 2 : i32
    %86 = vector.broadcast %c2_i32 : i32 to vector<8x1xi32>
    %87 = arith.addi %5, %86 : vector<8x1xi32>
    %c0_i32_29 = arith.constant 0 : i32
    %88 = vector.broadcast %c0_i32_29 : i32 to vector<8x1xi32>
    %89 = arith.cmpi slt, %87, %88 : vector<8x1xi32>
    %c4_i32_30 = arith.constant 4 : i32
    %90 = vector.broadcast %c4_i32_30 : i32 to vector<8x1xi32>
    %91 = arith.addi %87, %90 : vector<8x1xi32>
    %92 = arith.select %89, %91, %87 : vector<8x1xi1>, vector<8x1xi32>
    %c4_i32_31 = arith.constant 4 : i32
    %93 = vector.broadcast %c4_i32_31 : i32 to vector<8x1xi32>
    %94 = arith.cmpi sge, %92, %93 : vector<8x1xi32>
    %c4_i32_32 = arith.constant 4 : i32
    %95 = vector.broadcast %c4_i32_32 : i32 to vector<8x1xi32>
    %96 = arith.subi %92, %95 : vector<8x1xi32>
    %97 = arith.select %94, %96, %92 : vector<8x1xi1>, vector<8x1xi32>
    %c0_i32_33 = arith.constant 0 : i32
    %98 = vector.broadcast %c0_i32_33 : i32 to vector<8x1xi32>
    %99 = arith.cmpi eq, %97, %98 : vector<8x1xi32>
    %cst_34 = arith.constant 0.000000e+00 : f32
    %100 = vector.broadcast %cst_34 : f32 to vector<8x1xf32>
    %101 = arith.select %99, %33, %100 : vector<8x1xi1>, vector<8x1xf32>
    %102 = arith.addf %85, %101 : vector<8x1xf32>
    %cst_35 = arith.constant 0.000000e+00 : f32
    %103 = vector.broadcast %cst_35 : f32 to vector<8x1xf32>
    %c-1_i32_36 = arith.constant -1 : i32
    %104 = vector.broadcast %c-1_i32_36 : i32 to vector<8x1xi32>
    %105 = arith.addi %5, %104 : vector<8x1xi32>
    %c0_i32_37 = arith.constant 0 : i32
    %106 = vector.broadcast %c0_i32_37 : i32 to vector<8x1xi32>
    %107 = arith.cmpi slt, %105, %106 : vector<8x1xi32>
    %c4_i32_38 = arith.constant 4 : i32
    %108 = vector.broadcast %c4_i32_38 : i32 to vector<8x1xi32>
    %109 = arith.addi %105, %108 : vector<8x1xi32>
    %110 = arith.select %107, %109, %105 : vector<8x1xi1>, vector<8x1xi32>
    %c4_i32_39 = arith.constant 4 : i32
    %111 = vector.broadcast %c4_i32_39 : i32 to vector<8x1xi32>
    %112 = arith.cmpi sge, %110, %111 : vector<8x1xi32>
    %c4_i32_40 = arith.constant 4 : i32
    %113 = vector.broadcast %c4_i32_40 : i32 to vector<8x1xi32>
    %114 = arith.subi %110, %113 : vector<8x1xi32>
    %115 = arith.select %112, %114, %110 : vector<8x1xi1>, vector<8x1xi32>
    %c1_i32_41 = arith.constant 1 : i32
    %116 = vector.broadcast %c1_i32_41 : i32 to vector<8x1xi32>
    %117 = arith.cmpi eq, %115, %116 : vector<8x1xi32>
    %cst_42 = arith.constant 0.000000e+00 : f32
    %118 = vector.broadcast %cst_42 : f32 to vector<8x1xf32>
    %119 = arith.select %117, %13, %118 : vector<8x1xi1>, vector<8x1xf32>
    %120 = arith.addf %103, %119 : vector<8x1xf32>
    %c0_i32_43 = arith.constant 0 : i32
    %121 = vector.broadcast %c0_i32_43 : i32 to vector<8x1xi32>
    %122 = arith.addi %5, %121 : vector<8x1xi32>
    %c0_i32_44 = arith.constant 0 : i32
    %123 = vector.broadcast %c0_i32_44 : i32 to vector<8x1xi32>
    %124 = arith.cmpi slt, %122, %123 : vector<8x1xi32>
    %c4_i32_45 = arith.constant 4 : i32
    %125 = vector.broadcast %c4_i32_45 : i32 to vector<8x1xi32>
    %126 = arith.addi %122, %125 : vector<8x1xi32>
    %127 = arith.select %124, %126, %122 : vector<8x1xi1>, vector<8x1xi32>
    %c4_i32_46 = arith.constant 4 : i32
    %128 = vector.broadcast %c4_i32_46 : i32 to vector<8x1xi32>
    %129 = arith.cmpi sge, %127, %128 : vector<8x1xi32>
    %c4_i32_47 = arith.constant 4 : i32
    %130 = vector.broadcast %c4_i32_47 : i32 to vector<8x1xi32>
    %131 = arith.subi %127, %130 : vector<8x1xi32>
    %132 = arith.select %129, %131, %127 : vector<8x1xi1>, vector<8x1xi32>
    %c1_i32_48 = arith.constant 1 : i32
    %133 = vector.broadcast %c1_i32_48 : i32 to vector<8x1xi32>
    %134 = arith.cmpi eq, %132, %133 : vector<8x1xi32>
    %cst_49 = arith.constant 0.000000e+00 : f32
    %135 = vector.broadcast %cst_49 : f32 to vector<8x1xf32>
    %136 = arith.select %134, %20, %135 : vector<8x1xi1>, vector<8x1xf32>
    %137 = arith.addf %120, %136 : vector<8x1xf32>
    %c1_i32_50 = arith.constant 1 : i32
    %138 = vector.broadcast %c1_i32_50 : i32 to vector<8x1xi32>
    %139 = arith.addi %5, %138 : vector<8x1xi32>
    %c0_i32_51 = arith.constant 0 : i32
    %140 = vector.broadcast %c0_i32_51 : i32 to vector<8x1xi32>
    %141 = arith.cmpi slt, %139, %140 : vector<8x1xi32>
    %c4_i32_52 = arith.constant 4 : i32
    %142 = vector.broadcast %c4_i32_52 : i32 to vector<8x1xi32>
    %143 = arith.addi %139, %142 : vector<8x1xi32>
    %144 = arith.select %141, %143, %139 : vector<8x1xi1>, vector<8x1xi32>
    %c4_i32_53 = arith.constant 4 : i32
    %145 = vector.broadcast %c4_i32_53 : i32 to vector<8x1xi32>
    %146 = arith.cmpi sge, %144, %145 : vector<8x1xi32>
    %c4_i32_54 = arith.constant 4 : i32
    %147 = vector.broadcast %c4_i32_54 : i32 to vector<8x1xi32>
    %148 = arith.subi %144, %147 : vector<8x1xi32>
    %149 = arith.select %146, %148, %144 : vector<8x1xi1>, vector<8x1xi32>
    %c1_i32_55 = arith.constant 1 : i32
    %150 = vector.broadcast %c1_i32_55 : i32 to vector<8x1xi32>
    %151 = arith.cmpi eq, %149, %150 : vector<8x1xi32>
    %cst_56 = arith.constant 0.000000e+00 : f32
    %152 = vector.broadcast %cst_56 : f32 to vector<8x1xf32>
    %153 = arith.select %151, %28, %152 : vector<8x1xi1>, vector<8x1xf32>
    %154 = arith.addf %137, %153 : vector<8x1xf32>
    %c2_i32_57 = arith.constant 2 : i32
    %155 = vector.broadcast %c2_i32_57 : i32 to vector<8x1xi32>
    %156 = arith.addi %5, %155 : vector<8x1xi32>
    %c0_i32_58 = arith.constant 0 : i32
    %157 = vector.broadcast %c0_i32_58 : i32 to vector<8x1xi32>
    %158 = arith.cmpi slt, %156, %157 : vector<8x1xi32>
    %c4_i32_59 = arith.constant 4 : i32
    %159 = vector.broadcast %c4_i32_59 : i32 to vector<8x1xi32>
    %160 = arith.addi %156, %159 : vector<8x1xi32>
    %161 = arith.select %158, %160, %156 : vector<8x1xi1>, vector<8x1xi32>
    %c4_i32_60 = arith.constant 4 : i32
    %162 = vector.broadcast %c4_i32_60 : i32 to vector<8x1xi32>
    %163 = arith.cmpi sge, %161, %162 : vector<8x1xi32>
    %c4_i32_61 = arith.constant 4 : i32
    %164 = vector.broadcast %c4_i32_61 : i32 to vector<8x1xi32>
    %165 = arith.subi %161, %164 : vector<8x1xi32>
    %166 = arith.select %163, %165, %161 : vector<8x1xi1>, vector<8x1xi32>
    %c1_i32_62 = arith.constant 1 : i32
    %167 = vector.broadcast %c1_i32_62 : i32 to vector<8x1xi32>
    %168 = arith.cmpi eq, %166, %167 : vector<8x1xi32>
    %cst_63 = arith.constant 0.000000e+00 : f32
    %169 = vector.broadcast %cst_63 : f32 to vector<8x1xf32>
    %170 = arith.select %168, %33, %169 : vector<8x1xi1>, vector<8x1xf32>
    %171 = arith.addf %154, %170 : vector<8x1xf32>
    %cst_64 = arith.constant 0.000000e+00 : f32
    %172 = vector.broadcast %cst_64 : f32 to vector<8x1xf32>
    %c-1_i32_65 = arith.constant -1 : i32
    %173 = vector.broadcast %c-1_i32_65 : i32 to vector<8x1xi32>
    %174 = arith.addi %5, %173 : vector<8x1xi32>
    %c0_i32_66 = arith.constant 0 : i32
    %175 = vector.broadcast %c0_i32_66 : i32 to vector<8x1xi32>
    %176 = arith.cmpi slt, %174, %175 : vector<8x1xi32>
    %c4_i32_67 = arith.constant 4 : i32
    %177 = vector.broadcast %c4_i32_67 : i32 to vector<8x1xi32>
    %178 = arith.addi %174, %177 : vector<8x1xi32>
    %179 = arith.select %176, %178, %174 : vector<8x1xi1>, vector<8x1xi32>
    %c4_i32_68 = arith.constant 4 : i32
    %180 = vector.broadcast %c4_i32_68 : i32 to vector<8x1xi32>
    %181 = arith.cmpi sge, %179, %180 : vector<8x1xi32>
    %c4_i32_69 = arith.constant 4 : i32
    %182 = vector.broadcast %c4_i32_69 : i32 to vector<8x1xi32>
    %183 = arith.subi %179, %182 : vector<8x1xi32>
    %184 = arith.select %181, %183, %179 : vector<8x1xi1>, vector<8x1xi32>
    %c2_i32_70 = arith.constant 2 : i32
    %185 = vector.broadcast %c2_i32_70 : i32 to vector<8x1xi32>
    %186 = arith.cmpi eq, %184, %185 : vector<8x1xi32>
    %cst_71 = arith.constant 0.000000e+00 : f32
    %187 = vector.broadcast %cst_71 : f32 to vector<8x1xf32>
    %188 = arith.select %186, %13, %187 : vector<8x1xi1>, vector<8x1xf32>
    %189 = arith.addf %172, %188 : vector<8x1xf32>
    %c0_i32_72 = arith.constant 0 : i32
    %190 = vector.broadcast %c0_i32_72 : i32 to vector<8x1xi32>
    %191 = arith.addi %5, %190 : vector<8x1xi32>
    %c0_i32_73 = arith.constant 0 : i32
    %192 = vector.broadcast %c0_i32_73 : i32 to vector<8x1xi32>
    %193 = arith.cmpi slt, %191, %192 : vector<8x1xi32>
    %c4_i32_74 = arith.constant 4 : i32
    %194 = vector.broadcast %c4_i32_74 : i32 to vector<8x1xi32>
    %195 = arith.addi %191, %194 : vector<8x1xi32>
    %196 = arith.select %193, %195, %191 : vector<8x1xi1>, vector<8x1xi32>
    %c4_i32_75 = arith.constant 4 : i32
    %197 = vector.broadcast %c4_i32_75 : i32 to vector<8x1xi32>
    %198 = arith.cmpi sge, %196, %197 : vector<8x1xi32>
    %c4_i32_76 = arith.constant 4 : i32
    %199 = vector.broadcast %c4_i32_76 : i32 to vector<8x1xi32>
    %200 = arith.subi %196, %199 : vector<8x1xi32>
    %201 = arith.select %198, %200, %196 : vector<8x1xi1>, vector<8x1xi32>
    %c2_i32_77 = arith.constant 2 : i32
    %202 = vector.broadcast %c2_i32_77 : i32 to vector<8x1xi32>
    %203 = arith.cmpi eq, %201, %202 : vector<8x1xi32>
    %cst_78 = arith.constant 0.000000e+00 : f32
    %204 = vector.broadcast %cst_78 : f32 to vector<8x1xf32>
    %205 = arith.select %203, %20, %204 : vector<8x1xi1>, vector<8x1xf32>
    %206 = arith.addf %189, %205 : vector<8x1xf32>
    %c1_i32_79 = arith.constant 1 : i32
    %207 = vector.broadcast %c1_i32_79 : i32 to vector<8x1xi32>
    %208 = arith.addi %5, %207 : vector<8x1xi32>
    %c0_i32_80 = arith.constant 0 : i32
    %209 = vector.broadcast %c0_i32_80 : i32 to vector<8x1xi32>
    %210 = arith.cmpi slt, %208, %209 : vector<8x1xi32>
    %c4_i32_81 = arith.constant 4 : i32
    %211 = vector.broadcast %c4_i32_81 : i32 to vector<8x1xi32>
    %212 = arith.addi %208, %211 : vector<8x1xi32>
    %213 = arith.select %210, %212, %208 : vector<8x1xi1>, vector<8x1xi32>
    %c4_i32_82 = arith.constant 4 : i32
    %214 = vector.broadcast %c4_i32_82 : i32 to vector<8x1xi32>
    %215 = arith.cmpi sge, %213, %214 : vector<8x1xi32>
    %c4_i32_83 = arith.constant 4 : i32
    %216 = vector.broadcast %c4_i32_83 : i32 to vector<8x1xi32>
    %217 = arith.subi %213, %216 : vector<8x1xi32>
    %218 = arith.select %215, %217, %213 : vector<8x1xi1>, vector<8x1xi32>
    %c2_i32_84 = arith.constant 2 : i32
    %219 = vector.broadcast %c2_i32_84 : i32 to vector<8x1xi32>
    %220 = arith.cmpi eq, %218, %219 : vector<8x1xi32>
    %cst_85 = arith.constant 0.000000e+00 : f32
    %221 = vector.broadcast %cst_85 : f32 to vector<8x1xf32>
    %222 = arith.select %220, %28, %221 : vector<8x1xi1>, vector<8x1xf32>
    %223 = arith.addf %206, %222 : vector<8x1xf32>
    %c2_i32_86 = arith.constant 2 : i32
    %224 = vector.broadcast %c2_i32_86 : i32 to vector<8x1xi32>
    %225 = arith.addi %5, %224 : vector<8x1xi32>
    %c0_i32_87 = arith.constant 0 : i32
    %226 = vector.broadcast %c0_i32_87 : i32 to vector<8x1xi32>
    %227 = arith.cmpi slt, %225, %226 : vector<8x1xi32>
    %c4_i32_88 = arith.constant 4 : i32
    %228 = vector.broadcast %c4_i32_88 : i32 to vector<8x1xi32>
    %229 = arith.addi %225, %228 : vector<8x1xi32>
    %230 = arith.select %227, %229, %225 : vector<8x1xi1>, vector<8x1xi32>
    %c4_i32_89 = arith.constant 4 : i32
    %231 = vector.broadcast %c4_i32_89 : i32 to vector<8x1xi32>
    %232 = arith.cmpi sge, %230, %231 : vector<8x1xi32>
    %c4_i32_90 = arith.constant 4 : i32
    %233 = vector.broadcast %c4_i32_90 : i32 to vector<8x1xi32>
    %234 = arith.subi %230, %233 : vector<8x1xi32>
    %235 = arith.select %232, %234, %230 : vector<8x1xi1>, vector<8x1xi32>
    %c2_i32_91 = arith.constant 2 : i32
    %236 = vector.broadcast %c2_i32_91 : i32 to vector<8x1xi32>
    %237 = arith.cmpi eq, %235, %236 : vector<8x1xi32>
    %cst_92 = arith.constant 0.000000e+00 : f32
    %238 = vector.broadcast %cst_92 : f32 to vector<8x1xf32>
    %239 = arith.select %237, %33, %238 : vector<8x1xi1>, vector<8x1xf32>
    %240 = arith.addf %223, %239 : vector<8x1xf32>
    %cst_93 = arith.constant 0.000000e+00 : f32
    %241 = vector.broadcast %cst_93 : f32 to vector<8x1xf32>
    %c-1_i32_94 = arith.constant -1 : i32
    %242 = vector.broadcast %c-1_i32_94 : i32 to vector<8x1xi32>
    %243 = arith.addi %5, %242 : vector<8x1xi32>
    %c0_i32_95 = arith.constant 0 : i32
    %244 = vector.broadcast %c0_i32_95 : i32 to vector<8x1xi32>
    %245 = arith.cmpi slt, %243, %244 : vector<8x1xi32>
    %c4_i32_96 = arith.constant 4 : i32
    %246 = vector.broadcast %c4_i32_96 : i32 to vector<8x1xi32>
    %247 = arith.addi %243, %246 : vector<8x1xi32>
    %248 = arith.select %245, %247, %243 : vector<8x1xi1>, vector<8x1xi32>
    %c4_i32_97 = arith.constant 4 : i32
    %249 = vector.broadcast %c4_i32_97 : i32 to vector<8x1xi32>
    %250 = arith.cmpi sge, %248, %249 : vector<8x1xi32>
    %c4_i32_98 = arith.constant 4 : i32
    %251 = vector.broadcast %c4_i32_98 : i32 to vector<8x1xi32>
    %252 = arith.subi %248, %251 : vector<8x1xi32>
    %253 = arith.select %250, %252, %248 : vector<8x1xi1>, vector<8x1xi32>
    %c3_i32 = arith.constant 3 : i32
    %254 = vector.broadcast %c3_i32 : i32 to vector<8x1xi32>
    %255 = arith.cmpi eq, %253, %254 : vector<8x1xi32>
    %cst_99 = arith.constant 0.000000e+00 : f32
    %256 = vector.broadcast %cst_99 : f32 to vector<8x1xf32>
    %257 = arith.select %255, %13, %256 : vector<8x1xi1>, vector<8x1xf32>
    %258 = arith.addf %241, %257 : vector<8x1xf32>
    %c0_i32_100 = arith.constant 0 : i32
    %259 = vector.broadcast %c0_i32_100 : i32 to vector<8x1xi32>
    %260 = arith.addi %5, %259 : vector<8x1xi32>
    %c0_i32_101 = arith.constant 0 : i32
    %261 = vector.broadcast %c0_i32_101 : i32 to vector<8x1xi32>
    %262 = arith.cmpi slt, %260, %261 : vector<8x1xi32>
    %c4_i32_102 = arith.constant 4 : i32
    %263 = vector.broadcast %c4_i32_102 : i32 to vector<8x1xi32>
    %264 = arith.addi %260, %263 : vector<8x1xi32>
    %265 = arith.select %262, %264, %260 : vector<8x1xi1>, vector<8x1xi32>
    %c4_i32_103 = arith.constant 4 : i32
    %266 = vector.broadcast %c4_i32_103 : i32 to vector<8x1xi32>
    %267 = arith.cmpi sge, %265, %266 : vector<8x1xi32>
    %c4_i32_104 = arith.constant 4 : i32
    %268 = vector.broadcast %c4_i32_104 : i32 to vector<8x1xi32>
    %269 = arith.subi %265, %268 : vector<8x1xi32>
    %270 = arith.select %267, %269, %265 : vector<8x1xi1>, vector<8x1xi32>
    %c3_i32_105 = arith.constant 3 : i32
    %271 = vector.broadcast %c3_i32_105 : i32 to vector<8x1xi32>
    %272 = arith.cmpi eq, %270, %271 : vector<8x1xi32>
    %cst_106 = arith.constant 0.000000e+00 : f32
    %273 = vector.broadcast %cst_106 : f32 to vector<8x1xf32>
    %274 = arith.select %272, %20, %273 : vector<8x1xi1>, vector<8x1xf32>
    %275 = arith.addf %258, %274 : vector<8x1xf32>
    %c1_i32_107 = arith.constant 1 : i32
    %276 = vector.broadcast %c1_i32_107 : i32 to vector<8x1xi32>
    %277 = arith.addi %5, %276 : vector<8x1xi32>
    %c0_i32_108 = arith.constant 0 : i32
    %278 = vector.broadcast %c0_i32_108 : i32 to vector<8x1xi32>
    %279 = arith.cmpi slt, %277, %278 : vector<8x1xi32>
    %c4_i32_109 = arith.constant 4 : i32
    %280 = vector.broadcast %c4_i32_109 : i32 to vector<8x1xi32>
    %281 = arith.addi %277, %280 : vector<8x1xi32>
    %282 = arith.select %279, %281, %277 : vector<8x1xi1>, vector<8x1xi32>
    %c4_i32_110 = arith.constant 4 : i32
    %283 = vector.broadcast %c4_i32_110 : i32 to vector<8x1xi32>
    %284 = arith.cmpi sge, %282, %283 : vector<8x1xi32>
    %c4_i32_111 = arith.constant 4 : i32
    %285 = vector.broadcast %c4_i32_111 : i32 to vector<8x1xi32>
    %286 = arith.subi %282, %285 : vector<8x1xi32>
    %287 = arith.select %284, %286, %282 : vector<8x1xi1>, vector<8x1xi32>
    %c3_i32_112 = arith.constant 3 : i32
    %288 = vector.broadcast %c3_i32_112 : i32 to vector<8x1xi32>
    %289 = arith.cmpi eq, %287, %288 : vector<8x1xi32>
    %cst_113 = arith.constant 0.000000e+00 : f32
    %290 = vector.broadcast %cst_113 : f32 to vector<8x1xf32>
    %291 = arith.select %289, %28, %290 : vector<8x1xi1>, vector<8x1xf32>
    %292 = arith.addf %275, %291 : vector<8x1xf32>
    %c2_i32_114 = arith.constant 2 : i32
    %293 = vector.broadcast %c2_i32_114 : i32 to vector<8x1xi32>
    %294 = arith.addi %5, %293 : vector<8x1xi32>
    %c0_i32_115 = arith.constant 0 : i32
    %295 = vector.broadcast %c0_i32_115 : i32 to vector<8x1xi32>
    %296 = arith.cmpi slt, %294, %295 : vector<8x1xi32>
    %c4_i32_116 = arith.constant 4 : i32
    %297 = vector.broadcast %c4_i32_116 : i32 to vector<8x1xi32>
    %298 = arith.addi %294, %297 : vector<8x1xi32>
    %299 = arith.select %296, %298, %294 : vector<8x1xi1>, vector<8x1xi32>
    %c4_i32_117 = arith.constant 4 : i32
    %300 = vector.broadcast %c4_i32_117 : i32 to vector<8x1xi32>
    %301 = arith.cmpi sge, %299, %300 : vector<8x1xi32>
    %c4_i32_118 = arith.constant 4 : i32
    %302 = vector.broadcast %c4_i32_118 : i32 to vector<8x1xi32>
    %303 = arith.subi %299, %302 : vector<8x1xi32>
    %304 = arith.select %301, %303, %299 : vector<8x1xi1>, vector<8x1xi32>
    %c3_i32_119 = arith.constant 3 : i32
    %305 = vector.broadcast %c3_i32_119 : i32 to vector<8x1xi32>
    %306 = arith.cmpi eq, %304, %305 : vector<8x1xi32>
    %cst_120 = arith.constant 0.000000e+00 : f32
    %307 = vector.broadcast %cst_120 : f32 to vector<8x1xf32>
    %308 = arith.select %306, %33, %307 : vector<8x1xi1>, vector<8x1xf32>
    %309 = arith.addf %292, %308 : vector<8x1xf32>
    %310 = tpu.concatenate %102, %171, %240, %309 in 1 : vector<8x1xf32>, vector<8x1xf32>, vector<8x1xf32>, vector<8x1xf32> -> vector<8x4xf32>
    %311 = vector.shape_cast %102 : vector<8x1xf32> to vector<8x1xf32>
    %312 = vector.broadcast %311 : vector<8x1xf32> to vector<8x32xf32>
    %313 = vector.shape_cast %171 : vector<8x1xf32> to vector<8x1xf32>
    %314 = vector.broadcast %313 : vector<8x1xf32> to vector<8x32xf32>
    %315 = vector.shape_cast %240 : vector<8x1xf32> to vector<8x1xf32>
    %316 = vector.broadcast %315 : vector<8x1xf32> to vector<8x32xf32>
    %317 = vector.shape_cast %309 : vector<8x1xf32> to vector<8x1xf32>
    %318 = vector.broadcast %317 : vector<8x1xf32> to vector<8x32xf32>
    %c0_121 = arith.constant 0 : index
    %c0_122 = arith.constant 0 : index
    %319 = vector.load %arg2[%c0_121, %c0_122] : memref<8x16xf32, #tpu.memory_space<vmem>>, vector<8x16xf32>
    %320 = vector.broadcast %102 : vector<8x1xf32> to vector<8x16xf32>
    %321 = arith.mulf %320, %319 : vector<8x16xf32>
    %322 = vector.broadcast %171 : vector<8x1xf32> to vector<8x16xf32>
    %323 = arith.mulf %322, %319 : vector<8x16xf32>
    %324 = vector.broadcast %240 : vector<8x1xf32> to vector<8x16xf32>
    %325 = arith.mulf %324, %319 : vector<8x16xf32>
    %326 = vector.broadcast %309 : vector<8x1xf32> to vector<8x16xf32>
    %327 = arith.mulf %326, %319 : vector<8x16xf32>
    %328 = tpu.concatenate %321, %323, %325, %327, %310 in 1 : vector<8x16xf32>, vector<8x16xf32>, vector<8x16xf32>, vector<8x16xf32>, vector<8x4xf32> -> vector<8x68xf32>
    %c0_123 = arith.constant 0 : index
    %c0_124 = arith.constant 0 : index
    %329 = vector.load %arg3[%c0_123, %c0_124] : memref<344x32xf32, #tpu.memory_space<vmem>>, vector<68x32xf32>
    %cst_125 = arith.constant dense<0.000000e+00> : vector<8x32xf32>
    %330 = tpu.matmul %328, %329, %cst_125 {dimension_numbers = #tpu.dot_dimension_numbers<[1], [0], [0], [1], [0, 0, 1, 1], [], []>} : vector<8x68xf32>, vector<68x32xf32>, vector<8x32xf32> -> vector<8x32xf32>
    %cst_126 = arith.constant 0.000000e+00 : f32
    %331 = vector.broadcast %cst_126 : f32 to vector<8x32xf32>
    %332 = arith.maximumf %330, %331 : vector<8x32xf32>
    %333 = arith.mulf %312, %332 : vector<8x32xf32>
    %334 = arith.mulf %314, %332 : vector<8x32xf32>
    %335 = arith.mulf %316, %332 : vector<8x32xf32>
    %336 = arith.mulf %318, %332 : vector<8x32xf32>
    %337 = tpu.concatenate %333, %334, %335, %336, %310 in 1 : vector<8x32xf32>, vector<8x32xf32>, vector<8x32xf32>, vector<8x32xf32>, vector<8x4xf32> -> vector<8x132xf32>
    %c72 = arith.constant 72 : index
    %c0_127 = arith.constant 0 : index
    %338 = vector.load %arg3[%c72, %c0_127] : memref<344x32xf32, #tpu.memory_space<vmem>>, vector<132x32xf32>
    %cst_128 = arith.constant dense<0.000000e+00> : vector<8x32xf32>
    %339 = tpu.matmul %337, %338, %cst_128 {dimension_numbers = #tpu.dot_dimension_numbers<[1], [0], [0], [1], [0, 0, 1, 1], [], []>} : vector<8x132xf32>, vector<132x32xf32>, vector<8x32xf32> -> vector<8x32xf32>
    %cst_129 = arith.constant 0.000000e+00 : f32
    %340 = vector.broadcast %cst_129 : f32 to vector<8x32xf32>
    %341 = arith.maximumf %339, %340 : vector<8x32xf32>
    %342 = arith.mulf %312, %341 : vector<8x32xf32>
    %343 = arith.mulf %314, %341 : vector<8x32xf32>
    %344 = arith.mulf %316, %341 : vector<8x32xf32>
    %345 = arith.mulf %318, %341 : vector<8x32xf32>
    %346 = tpu.concatenate %342, %343, %344, %345, %310 in 1 : vector<8x32xf32>, vector<8x32xf32>, vector<8x32xf32>, vector<8x32xf32>, vector<8x4xf32> -> vector<8x132xf32>
    %c208 = arith.constant 208 : index
    %c0_130 = arith.constant 0 : index
    %347 = vector.load %arg3[%c208, %c0_130] : memref<344x32xf32, #tpu.memory_space<vmem>>, vector<132x32xf32>
    %cst_131 = arith.constant dense<0.000000e+00> : vector<8x32xf32>
    %348 = tpu.matmul %346, %347, %cst_131 {dimension_numbers = #tpu.dot_dimension_numbers<[1], [0], [0], [1], [0, 0, 1, 1], [], []>} : vector<8x132xf32>, vector<132x32xf32>, vector<8x32xf32> -> vector<8x32xf32>
    %cst_132 = arith.constant 0.000000e+00 : f32
    %349 = vector.broadcast %cst_132 : f32 to vector<8x32xf32>
    %350 = arith.maximumf %348, %349 : vector<8x32xf32>
    %c0_133 = arith.constant 0 : index
    %c0_134 = arith.constant 0 : index
    %351 = vector.load %arg4[%c0_133, %c0_134] : memref<32x128xf32, #tpu.memory_space<vmem>>, vector<32x128xf32>
    %cst_135 = arith.constant dense<0.000000e+00> : vector<8x128xf32>
    %352 = tpu.matmul %350, %351, %cst_135 {dimension_numbers = #tpu.dot_dimension_numbers<[1], [0], [0], [1], [0, 0, 1, 1], [], []>} : vector<8x32xf32>, vector<32x128xf32>, vector<8x128xf32> -> vector<8x128xf32>
    %c0_136 = arith.constant 0 : index
    %c0_137 = arith.constant 0 : index
    %353 = vector.load %arg5[%c0_136, %c0_137] : memref<1x128xf32, #tpu.memory_space<vmem>>, vector<1x128xf32>
    %354 = vector.broadcast %353 : vector<1x128xf32> to vector<8x128xf32>
    %355 = arith.addf %352, %354 : vector<8x128xf32>
    %356 = tpu.iota {dimensions = array<i32: 1>} : vector<8x128xi32>
    %c8_i32 = arith.constant 8 : i32
    %357 = vector.broadcast %c8_i32 : i32 to vector<8x128xi32>
    %358 = arith.cmpi sge, %356, %357 : vector<8x128xi32>
    %c16_i32 = arith.constant 16 : i32
    %359 = vector.broadcast %c16_i32 : i32 to vector<8x128xi32>
    %360 = arith.cmpi slt, %356, %359 : vector<8x128xi32>
    %361 = arith.andi %358, %360 : vector<8x128xi1>
    %cst_138 = arith.constant -2.000000e+01 : f32
    %cst_139 = arith.constant 1.000000e+01 : f32
    %362 = vector.broadcast %cst_138 : f32 to vector<8x128xf32>
    %363 = arith.maximumf %362, %355 : vector<8x128xf32>
    %364 = vector.broadcast %cst_139 : f32 to vector<8x128xf32>
    %365 = arith.minimumf %364, %363 : vector<8x128xf32>
    %366 = arith.select %361, %365, %355 : vector<8x128xi1>, vector<8x128xf32>
    %c0_140 = arith.constant 0 : index
    %c0_141 = arith.constant 0 : index
    %367 = vector.load %arg6[%c0_140, %c0_141] : memref<8x128xf32, #tpu.memory_space<vmem>>, vector<8x128xf32>
    tpu.vector_store %arg6[%c0_140, %c0_141], %366 {strides = array<i32>} : memref<8x128xf32, #tpu.memory_space<vmem>>, vector<8x128xf32>,
    return
  }
  func.func @transform_0(%arg0: i32) -> (i32, i32) {
    %c0_i32 = arith.constant 0 : i32
    %c0_i32_0 = arith.constant 0 : i32
    return %arg0, %c0_i32 : i32, i32
  }
  func.func @transform_1(%arg0: i32) -> (i32, i32) {
    %c0_i32 = arith.constant 0 : i32
    %c0_i32_0 = arith.constant 0 : i32
    return %arg0, %c0_i32 : i32, i32
  }
  func.func @transform_2(%arg0: i32) -> (i32, i32) {
    %c0_i32 = arith.constant 0 : i32
    %c0_i32_0 = arith.constant 0 : i32
    %c0_i32_1 = arith.constant 0 : i32
    return %c0_i32, %c0_i32_0 : i32, i32
  }
  func.func @transform_3(%arg0: i32) -> (i32, i32) {
    %c0_i32 = arith.constant 0 : i32
    %c0_i32_0 = arith.constant 0 : i32
    %c0_i32_1 = arith.constant 0 : i32
    return %c0_i32, %c0_i32_0 : i32, i32
  }
  func.func @transform_4(%arg0: i32) -> (i32, i32) {
    %c0_i32 = arith.constant 0 : i32
    %c0_i32_0 = arith.constant 0 : i32
    %c0_i32_1 = arith.constant 0 : i32
    return %c0_i32, %c0_i32_0 : i32, i32
  }
  func.func @transform_5(%arg0: i32) -> (i32, i32) {
    %c0_i32 = arith.constant 0 : i32
    %c0_i32_0 = arith.constant 0 : i32
    return %arg0, %c0_i32 : i32, i32
  }
}

</mosaic_0001>

<llo_original>
// kernel: pmlp_actor_forward.1
$region0: #{pmlp_actor_forward.1}
  #allocation0 [shape = 'u32[]', space=smem, size = 0x4, offset = 0x4, fixed_abs, tag = 'smem constant byte address 0x4 - core index']
  #allocation1 [shape = 'u32[144,128]{1,0:T(1,128)}', space=vmem, size = 0x12000, scoped, tag = 'internal scratch']
  %s0 = inlined_call_operand.vmem [shape: f32[8,1], index: 0, kind: input, shape index: {}]
  %s1 = inlined_call_operand.vmem [shape: f32[8,16], index: 1, kind: input, shape index: {}]
  %s2 = inlined_call_operand.vmem [shape: f32[344,32], index: 2, kind: input, shape index: {}]
  %s3 = inlined_call_operand.vmem [shape: f32[32,128], index: 3, kind: input, shape index: {}]
  %s4 = inlined_call_operand.vmem [shape: f32[1,128], index: 4, kind: input, shape index: {}]
  %s5 = inlined_call_operand.vmem [shape: f32[8,128], index: 5, kind: output, shape index: {}]
  %s6 = sld [smem:[#allocation0]]
  $region30: #{pmlp_actor_forward.1} parent=0
    _
  %s8 = ssub.s32 1, %s6
  %s9 = scalar_select 0, %s8, %s6
  // Predicated region
  $region2: #{pmlp_actor_forward.1} parent=0 // pred_check
    _
  $region3: #{pmlp_actor_forward.1} parent=0 // pred_check_branch
    %11 = sbr.rel (0) target = $region5
  $region4: #{pmlp_actor_forward.1} parent=0 // pred_region
    _
  $region5: #{pmlp_actor_forward.1} parent=0 // pred_fallthru
    _
  // Predicated region
  $region6: #{pmlp_actor_forward.1} parent=0 // pred_check
    _
  $region7: #{pmlp_actor_forward.1} parent=0 // pred_check_branch
    %13 = sbr.rel (0) target = $region9
  $region8: #{pmlp_actor_forward.1} parent=0 // pred_region
    _
  $region9: #{pmlp_actor_forward.1} parent=0 // pred_fallthru
    _
  // Predicated region
  $region10: #{pmlp_actor_forward.1} parent=0 // pred_check
    _
  $region11: #{pmlp_actor_forward.1} parent=0 // pred_check_branch
    %15 = sbr.rel (0) target = $region13
  $region12: #{pmlp_actor_forward.1} parent=0 // pred_region
    _
  $region13: #{pmlp_actor_forward.1} parent=0 // pred_fallthru
    _
  // Predicated region
  $region14: #{pmlp_actor_forward.1} parent=0 // pred_check
    _
  $region15: #{pmlp_actor_forward.1} parent=0 // pred_check_branch
    %17 = sbr.rel (0) target = $region17
  $region16: #{pmlp_actor_forward.1} parent=0 // pred_region
    _
  $region17: #{pmlp_actor_forward.1} parent=0 // pred_fallthru
    _
  // Predicated region
  $region18: #{pmlp_actor_forward.1} parent=0 // pred_check
    _
  $region19: #{pmlp_actor_forward.1} parent=0 // pred_check_branch
    %19 = sbr.rel (0) target = $region21
  $region20: #{pmlp_actor_forward.1} parent=0 // pred_region
    _
  $region21: #{pmlp_actor_forward.1} parent=0 // pred_fallthru
    _
  %v20 = vld [vmem:[%s0] sm:$0xff]
  %v21 = vmul.f32 %v20, 0.63661975
  %v22 = vfloor.f32 %v21
  %v23 = vsub.f32 %v21, %v22
  %v24 = vcvt.f32.s32.to.zero.pseudo %v22
  %v25 = vmul.f32 %v23, %v23
  %v26 = vmul.f32 %v25, %v23
  %v27 = vmul.f32 %v23, -0.5
  %v28 = vadd.f32 %v27, %v25
  %v29 = vmul.f32 %v26, 0.5
  %v30 = vsub.f32 %v28, %v29
  %v31 = vmul.f32 %v25, 2.5
  %v32 = vsub.f32 1.0, %v31
  %v33 = vmul.f32 %v26, 1.5
  %v34 = vadd.f32 %v32, %v33
  %v35 = vmul.f32 %v23, 0.5
  %v36 = vmul.f32 %v25, 2.0
  %v37 = vadd.f32 %v35, %v36
  %v38 = vsub.f32 %v37, %v33
  %v39 = vmul.f32 %v25, -0.5
  %v40 = vadd.f32 %v39, %v29
  %v41 = vadd.s32 %v24, 4294967295
  %vm42 = vcmp.lt.s32.totalorder %v41, 0
  %v43 = vadd.s32 %v41, 4
  %v44 = vsel %vm42, %v43, %v41
  %vm45 = vcmp.ge.s32.totalorder %v44, 4
  %v46 = vsub.s32 %v44, 4
  %v47 = vsel %vm45, %v46, %v44
  %vm48 = vcmp.eq.s32.totalorder %v47, 0
  %v49 = vsel %vm48, %v30, 0.0
  %v50 = vadd.f32 %v49, 0.0
  %vm51 = vcmp.lt.s32.totalorder %v24, 0
  %v52 = vadd.s32 %v24, 4
  %v53 = vsel %vm51, %v52, %v24
  %vm54 = vcmp.ge.s32.totalorder %v53, 4
  %v55 = vsub.s32 %v53, 4
  %v56 = vsel %vm54, %v55, %v53
  %vm57 = vcmp.eq.s32.totalorder %v56, 0
  %v58 = vsel %vm57, %v34, 0.0
  %v59 = vadd.f32 %v50, %v58
  %v60 = vadd.s32 %v24, 1
  %vm61 = vcmp.lt.s32.totalorder %v60, 0
  %v62 = vadd.s32 %v60, 4
  %v63 = vsel %vm61, %v62, %v60
  %vm64 = vcmp.ge.s32.totalorder %v63, 4
  %v65 = vsub.s32 %v63, 4
  %v66 = vsel %vm64, %v65, %v63
  %vm67 = vcmp.eq.s32.totalorder %v66, 0
  %v68 = vsel %vm67, %v38, 0.0
  %v69 = vadd.f32 %v59, %v68
  %v70 = vadd.s32 %v24, 2
  %vm71 = vcmp.lt.s32.totalorder %v70, 0
  %v72 = vadd.s32 %v70, 4
  %v73 = vsel %vm71, %v72, %v70
  %vm74 = vcmp.ge.s32.totalorder %v73, 4
  %v75 = vsub.s32 %v73, 4
  %v76 = vsel %vm74, %v75, %v73
  %vm77 = vcmp.eq.s32.totalorder %v76, 0
  %v78 = vsel %vm77, %v40, 0.0
  %v79 = vadd.f32 %v69, %v78
  %vm80 = vcmp.eq.s32.totalorder %v47, 1
  %v81 = vsel %vm80, %v30, 0.0
  %v82 = vadd.f32 %v81, 0.0
  %vm83 = vcmp.eq.s32.totalorder %v56, 1
  %v84 = vsel %vm83, %v34, 0.0
  %v85 = vadd.f32 %v82, %v84
  %vm86 = vcmp.eq.s32.totalorder %v66, 1
  %v87 = vsel %vm86, %v38, 0.0
  %v88 = vadd.f32 %v85, %v87
  %vm89 = vcmp.eq.s32.totalorder %v76, 1
  %v90 = vsel %vm89, %v40, 0.0
  %v91 = vadd.f32 %v88, %v90
  %vm92 = vcmp.eq.s32.totalorder %v47, 2
  %v93 = vsel %vm92, %v30, 0.0
  %v94 = vadd.f32 %v93, 0.0
  %vm95 = vcmp.eq.s32.totalorder %v56, 2
  %v96 = vsel %vm95, %v34, 0.0
  %v97 = vadd.f32 %v94, %v96
  %vm98 = vcmp.eq.s32.totalorder %v66, 2
  %v99 = vsel %vm98, %v38, 0.0
  %v100 = vadd.f32 %v97, %v99
  %vm101 = vcmp.eq.s32.totalorder %v76, 2
  %v102 = vsel %vm101, %v40, 0.0
  %v103 = vadd.f32 %v100, %v102
  %vm104 = vcmp.eq.s32.totalorder %v47, 3
  %v105 = vsel %vm104, %v30, 0.0
  %v106 = vadd.f32 %v105, 0.0
  %vm107 = vcmp.eq.s32.totalorder %v56, 3
  %v108 = vsel %vm107, %v34, 0.0
  %v109 = vadd.f32 %v106, %v108
  %vm110 = vcmp.eq.s32.totalorder %v66, 3
  %v111 = vsel %vm110, %v38, 0.0
  %v112 = vadd.f32 %v109, %v111
  %vm113 = vcmp.eq.s32.totalorder %v76, 3
  %v114 = vsel %vm113, %v40, 0.0
  %v115 = vadd.f32 %v112, %v114
  %117 = vrot.lane.b32.xlu0 %v91, 1
  %v118 = vpop.permute.xlu0 %117
  %121 = vrot.lane.b32.xlu0 %v103, 2
  %v122 = vpop.permute.xlu0 %121
  %125 = vrot.lane.b32.xlu0 %v115, 3
  %v126 = vpop.permute.xlu0 %125
  %vm128 = vcmask 7168
  %v129 = vsel %vm128, %v79, %v118
  %vm130 = vcmask 15360
  %v131 = vsel %vm130, %v129, %v122
  %vm132 = vcmask 23552
  %v133 = vsel %vm132, %v131, %v126
  %135 = vset.pattern.permute.xlu0 0
  %136 = vperm.xlu0 %135, %v79
  %v137 = vpop.permute.xlu0 %136
  %139 = vset.pattern.permute.xlu0 0
  %140 = vperm.xlu0 %139, %v91
  %v141 = vpop.permute.xlu0 %140
  %143 = vset.pattern.permute.xlu0 0
  %144 = vperm.xlu0 %143, %v103
  %v145 = vpop.permute.xlu0 %144
  %147 = vset.pattern.permute.xlu0 0
  %148 = vperm.xlu0 %147, %v115
  %v149 = vpop.permute.xlu0 %148
  %v151 = vld [vmem:[%s1] sm:$0xff]
  %v152 = vmul.f32 %v137, %v151
  %v153 = vmul.f32 %v141, %v151
  %v154 = vmul.f32 %v145, %v151
  %v155 = vmul.f32 %v149, %v151
  %157 = vrot.lane.b32.xlu0 %v153, 16
  %v158 = vpop.permute.xlu0 %157
  %161 = vrot.lane.b32.xlu0 %v154, 32
  %v162 = vpop.permute.xlu0 %161
  %165 = vrot.lane.b32.xlu0 %v155, 48
  %v166 = vpop.permute.xlu0 %165
  %169 = vrot.lane.b32.xlu0 %v133, 64
  %v170 = vpop.permute.xlu0 %169
  %vm172 = vcmask 130048
  %v173 = vsel %vm172, %v152, %v158
  %vm174 = vcmask 261120
  %v175 = vsel %vm174, %v173, %v162
  %vm176 = vcmask 392192
  %v177 = vsel %vm176, %v175, %v166
  %vm178 = vcmask 523264
  %v179 = vsel %vm178, %v177, %v170
  %v180 = vld [vmem:[%s2] sm:$0xff]
  %v181 = vld [vmem:[%s2 + $0x8] sm:$0xff]
  %v182 = vld [vmem:[%s2 + $0x10] sm:$0xff]
  %v183 = vld [vmem:[%s2 + $0x18] sm:$0xff]
  %v184 = vld [vmem:[%s2 + $0x20] sm:$0xff]
  %v185 = vld [vmem:[%s2 + $0x28] sm:$0xff]
  %v186 = vld [vmem:[%s2 + $0x30] sm:$0xff]
  %v187 = vld [vmem:[%s2 + $0x38] sm:$0xff]
  %v188 = vld [vmem:[%s2 + $0x40] sm:$0xf]
  %vm189 = vcmask 556032
  %v191 = vsel %vm189, %v179, 0
  %vm193 = vcmask 1043456
  %v195 = vsel %vm193, %v188, 0
  %197 = vmatprep.subr.mxu0 0.0
  %198 = vmatpush1.msra.mxu0 0.0
  %199 = vmatprep.subr.mxu0 0.0
  %200 = vmatpush1.msra.mxu0 0.0
  %201 = vmatprep.subr.mxu0 0.0
  %202 = vmatpush1.msra.mxu0 0.0
  %203 = vmatprep.subr.mxu0 0.0
  %204 = vmatpush1.msra.mxu0 0.0
  %205 = vmatprep.subr.mxu0 0.0
  %206 = vmatpush1.msra.mxu0 0.0
  %207 = vmatprep.subr.mxu0 0.0
  %208 = vmatpush1.msra.mxu0 0.0
  %209 = vmatprep.subr.mxu0 0.0
  %210 = vmatpush1.msra.mxu0 0.0
  %211 = vmatprep.subr.mxu0 0.0
  %212 = vmatpush1.msra.mxu0 %v195
  %213 = vmatprep.subr.mxu0 0.0
  %214 = vmatpush1.msra.mxu0 %v187
  %215 = vmatprep.subr.mxu0 0.0
  %216 = vmatpush1.msra.mxu0 %v186
  %217 = vmatprep.subr.mxu0 0.0
  %218 = vmatpush1.msra.mxu0 %v185
  %219 = vmatprep.subr.mxu0 0.0
  %220 = vmatpush1.msra.mxu0 %v184
  %221 = vmatprep.subr.mxu0 0.0
  %222 = vmatpush1.msra.mxu0 %v183
  %223 = vmatprep.subr.mxu0 0.0
  %224 = vmatpush1.msra.mxu0 %v182
  %225 = vmatprep.subr.mxu0 0.0
  %226 = vmatpush1.msra.mxu0 %v181
  %227 = vmatprep.subr.mxu0 0.0
  %228 = vmatpush1.msra.mxu0 %v180
  %229 = vmatprep.subr.mxu0 0.0
  %230 = vmatpush2.msra.mxu0 0.0
  %231 = vmatprep.subr.mxu0 0.0
  %232 = vmatpush2.msra.mxu0 0.0
  %233 = vmatprep.subr.mxu0 0.0
  %234 = vmatpush2.msra.mxu0 0.0
  %235 = vmatprep.subr.mxu0 0.0
  %236 = vmatpush2.msra.mxu0 0.0
  %237 = vmatprep.subr.mxu0 0.0
  %238 = vmatpush2.msra.mxu0 0.0
  %239 = vmatprep.subr.mxu0 0.0
  %240 = vmatpush2.msra.mxu0 0.0
  %241 = vmatprep.subr.mxu0 0.0
  %242 = vmatpush2.msra.mxu0 0.0
  %243 = vmatprep.subr.mxu0 0.0
  %244 = vmatpush2.msra.mxu0 0.0
  %245 = vmatprep.subr.mxu0 0.0
  %246 = vmatpush2.msra.mxu0 0.0
  %247 = vmatprep.subr.mxu0 0.0
  %248 = vmatpush2.msra.mxu0 0.0
  %249 = vmatprep.subr.mxu0 0.0
  %250 = vmatpush2.msra.mxu0 0.0
  %251 = vmatprep.subr.mxu0 0.0
  %252 = vmatpush2.msra.mxu0 0.0
  %253 = vmatprep.subr.mxu0 0.0
  %254 = vmatpush2.msra.mxu0 0.0
  %255 = vmatprep.subr.mxu0 0.0
  %256 = vmatpush2.msra.mxu0 0.0
  %257 = vmatprep.subr.mxu0 0.0
  %258 = vmatpush2.msra.mxu0 0.0
  %259 = vmatprep.subr.mxu0 0.0
  %260 = vmatpush2.msra.mxu0 0.0
  %261 = vmatprep.mubr.f32.mxu0 0.0
  %262 = vmatmul.mubr.f32.gmra.mxu0 %v191
  %v263 = vpop.f32.mrf.mxu0
  %v264 = vadd.f32 0.0, %v263
  %v265 = vpop.f32.mrf.mxu0
  %266 = vdwg.mxu0
  %v267 = vmax.f32 %v264, 0.0
  %v268 = vmul.f32 %v137, %v267
  %v269 = vmul.f32 %v141, %v267
  %v270 = vmul.f32 %v145, %v267
  %v271 = vmul.f32 %v149, %v267
  %273 = vrot.lane.b32.xlu0 %v269, 32
  %v274 = vpop.permute.xlu0 %273
  %277 = vrot.lane.b32.xlu0 %v270, 64
  %v278 = vpop.permute.xlu0 %277
  %281 = vrot.lane.b32.xlu0 %v271, 96
  %v282 = vpop.permute.xlu0 %281
  %v284 = vsel %vm174, %v268, %v274
  %v285 = vsel %vm178, %v284, %v278
  %vm286 = vcmask 785408
  %v287 = vsel %vm286, %v285, %v282
  %v288 = vld [vmem:[%s2 + $0x48] sm:$0xff]
  %v289 = vld [vmem:[%s2 + $0x50] sm:$0xff]
  %v290 = vld [vmem:[%s2 + $0x58] sm:$0xff]
  %v291 = vld [vmem:[%s2 + $0x60] sm:$0xff]
  %v292 = vld [vmem:[%s2 + $0x68] sm:$0xff]
  %v293 = vld [vmem:[%s2 + $0x70] sm:$0xff]
  %v294 = vld [vmem:[%s2 + $0x78] sm:$0xff]
  %v295 = vld [vmem:[%s2 + $0x80] sm:$0xff]
  %v296 = vld [vmem:[%s2 + $0x88] sm:$0xff]
  %v297 = vld [vmem:[%s2 + $0x90] sm:$0xff]
  %v298 = vld [vmem:[%s2 + $0x98] sm:$0xff]
  %v299 = vld [vmem:[%s2 + $0xa0] sm:$0xff]
  %v300 = vld [vmem:[%s2 + $0xa8] sm:$0xff]
  %v301 = vld [vmem:[%s2 + $0xb0] sm:$0xff]
  %v302 = vld [vmem:[%s2 + $0xb8] sm:$0xff]
  %v303 = vld [vmem:[%s2 + $0xc0] sm:$0xff]
  %v304 = vld [vmem:[%s2 + $0xc8] sm:$0xf]
  %vm305 = vcmask 31744
  %v306 = vsel %vm305, %v133, 0
  %v309 = vsel %vm193, %v304, 0
  %311 = vmatprep.subr.mxu0 0.0
  %312 = vmatpush1.msra.mxu0 %v303
  %313 = vmatprep.subr.mxu0 0.0
  %314 = vmatpush1.msra.mxu0 %v302
  %315 = vmatprep.subr.mxu0 0.0
  %316 = vmatpush1.msra.mxu0 %v301
  %317 = vmatprep.subr.mxu0 0.0
  %318 = vmatpush1.msra.mxu0 %v300
  %319 = vmatprep.subr.mxu0 0.0
  %320 = vmatpush1.msra.mxu0 %v299
  %321 = vmatprep.subr.mxu0 0.0
  %322 = vmatpush1.msra.mxu0 %v298
  %323 = vmatprep.subr.mxu0 0.0
  %324 = vmatpush1.msra.mxu0 %v297
  %325 = vmatprep.subr.mxu0 0.0
  %326 = vmatpush1.msra.mxu0 %v296
  %327 = vmatprep.subr.mxu0 0.0
  %328 = vmatpush1.msra.mxu0 %v295
  %329 = vmatprep.subr.mxu0 0.0
  %330 = vmatpush1.msra.mxu0 %v294
  %331 = vmatprep.subr.mxu0 0.0
  %332 = vmatpush1.msra.mxu0 %v293
  %333 = vmatprep.subr.mxu0 0.0
  %334 = vmatpush1.msra.mxu0 %v292
  %335 = vmatprep.subr.mxu0 0.0
  %336 = vmatpush1.msra.mxu0 %v291
  %337 = vmatprep.subr.mxu0 0.0
  %338 = vmatpush1.msra.mxu0 %v290
  %339 = vmatprep.subr.mxu0 0.0
  %340 = vmatpush1.msra.mxu0 %v289
  %341 = vmatprep.subr.mxu0 0.0
  %342 = vmatpush1.msra.mxu0 %v288
  %343 = vmatprep.subr.mxu0 0.0
  %344 = vmatpush2.msra.mxu0 0.0
  %345 = vmatprep.subr.mxu0 0.0
  %346 = vmatpush2.msra.mxu0 0.0
  %347 = vmatprep.subr.mxu0 0.0
  %348 = vmatpush2.msra.mxu0 0.0
  %349 = vmatprep.subr.mxu0 0.0
  %350 = vmatpush2.msra.mxu0 0.0
  %351 = vmatprep.subr.mxu0 0.0
  %352 = vmatpush2.msra.mxu0 0.0
  %353 = vmatprep.subr.mxu0 0.0
  %354 = vmatpush2.msra.mxu0 0.0
  %355 = vmatprep.subr.mxu0 0.0
  %356 = vmatpush2.msra.mxu0 0.0
  %357 = vmatprep.subr.mxu0 0.0
  %358 = vmatpush2.msra.mxu0 0.0
  %359 = vmatprep.subr.mxu0 0.0
  %360 = vmatpush2.msra.mxu0 0.0
  %361 = vmatprep.subr.mxu0 0.0
  %362 = vmatpush2.msra.mxu0 0.0
  %363 = vmatprep.subr.mxu0 0.0
  %364 = vmatpush2.msra.mxu0 0.0
  %365 = vmatprep.subr.mxu0 0.0
  %366 = vmatpush2.msra.mxu0 0.0
  %367 = vmatprep.subr.mxu0 0.0
  %368 = vmatpush2.msra.mxu0 0.0
  %369 = vmatprep.subr.mxu0 0.0
  %370 = vmatpush2.msra.mxu0 0.0
  %371 = vmatprep.subr.mxu0 0.0
  %372 = vmatpush2.msra.mxu0 0.0
  %373 = vmatprep.subr.mxu0 0.0
  %374 = vmatpush2.msra.mxu0 %v309
  %375 = vmatprep.mubr.f32.mxu0 %v306
  %376 = vmatmul.mubr.f32.gmra.mxu0 %v287
  %v377 = vpop.f32.mrf.mxu0
  %v378 = vadd.f32 0.0, %v377
  %v379 = vpop.f32.mrf.mxu0
  %380 = vdwg.mxu0
  %v381 = vmax.f32 %v378, 0.0
  %v382 = vmul.f32 %v137, %v381
  %v383 = vmul.f32 %v141, %v381
  %v384 = vmul.f32 %v145, %v381
  %v385 = vmul.f32 %v149, %v381
  %387 = vrot.lane.b32.xlu0 %v383, 32
  %v388 = vpop.permute.xlu0 %387
  %391 = vrot.lane.b32.xlu0 %v384, 64
  %v392 = vpop.permute.xlu0 %391
  %395 = vrot.lane.b32.xlu0 %v385, 96
  %v396 = vpop.permute.xlu0 %395
  %v398 = vsel %vm174, %v382, %v388
  %v399 = vsel %vm178, %v398, %v392
  %v400 = vsel %vm286, %v399, %v396
  %v401 = vld [vmem:[%s2 + $0xd0] sm:$0xff]
  %v402 = vld [vmem:[%s2 + $0xd8] sm:$0xff]
  %v403 = vld [vmem:[%s2 + $0xe0] sm:$0xff]
  %v404 = vld [vmem:[%s2 + $0xe8] sm:$0xff]
  %v405 = vld [vmem:[%s2 + $0xf0] sm:$0xff]
  %v406 = vld [vmem:[%s2 + $0xf8] sm:$0xff]
  %v407 = vld [vmem:[%s2 + $0x100] sm:$0xff]
  %v408 = vld [vmem:[%s2 + $0x108] sm:$0xff]
  %v409 = vld [vmem:[%s2 + $0x110] sm:$0xff]
  %v410 = vld [vmem:[%s2 + $0x118] sm:$0xff]
  %v411 = vld [vmem:[%s2 + $0x120] sm:$0xff]
  %v412 = vld [vmem:[%s2 + $0x128] sm:$0xff]
  %v413 = vld [vmem:[%s2 + $0x130] sm:$0xff]
  %v414 = vld [vmem:[%s2 + $0x138] sm:$0xff]
  %v415 = vld [vmem:[%s2 + $0x140] sm:$0xff]
  %v416 = vld [vmem:[%s2 + $0x148] sm:$0xff]
  %v417 = vld [vmem:[%s2 + $0x150] sm:$0xf]
  %v419 = vsel %vm193, %v417, 0
  %421 = vmatprep.subr.mxu0 0.0
  %422 = vmatpush1.msra.mxu0 %v416
  %423 = vmatprep.subr.mxu0 0.0
  %424 = vmatpush1.msra.mxu0 %v415
  %425 = vmatprep.subr.mxu0 0.0
  %426 = vmatpush1.msra.mxu0 %v414
  %427 = vmatprep.subr.mxu0 0.0
  %428 = vmatpush1.msra.mxu0 %v413
  %429 = vmatprep.subr.mxu0 0.0
  %430 = vmatpush1.msra.mxu0 %v412
  %431 = vmatprep.subr.mxu0 0.0
  %432 = vmatpush1.msra.mxu0 %v411
  %433 = vmatprep.subr.mxu0 0.0
  %434 = vmatpush1.msra.mxu0 %v410
  %435 = vmatprep.subr.mxu0 0.0
  %436 = vmatpush1.msra.mxu0 %v409
  %437 = vmatprep.subr.mxu0 0.0
  %438 = vmatpush1.msra.mxu0 %v408
  %439 = vmatprep.subr.mxu0 0.0
  %440 = vmatpush1.msra.mxu0 %v407
  %441 = vmatprep.subr.mxu0 0.0
  %442 = vmatpush1.msra.mxu0 %v406
  %443 = vmatprep.subr.mxu0 0.0
  %444 = vmatpush1.msra.mxu0 %v405
  %445 = vmatprep.subr.mxu0 0.0
  %446 = vmatpush1.msra.mxu0 %v404
  %447 = vmatprep.subr.mxu0 0.0
  %448 = vmatpush1.msra.mxu0 %v403
  %449 = vmatprep.subr.mxu0 0.0
  %450 = vmatpush1.msra.mxu0 %v402
  %451 = vmatprep.subr.mxu0 0.0
  %452 = vmatpush1.msra.mxu0 %v401
  %453 = vmatprep.subr.mxu0 0.0
  %454 = vmatpush2.msra.mxu0 0.0
  %455 = vmatprep.subr.mxu0 0.0
  %456 = vmatpush2.msra.mxu0 0.0
  %457 = vmatprep.subr.mxu0 0.0
  %458 = vmatpush2.msra.mxu0 0.0
  %459 = vmatprep.subr.mxu0 0.0
  %460 = vmatpush2.msra.mxu0 0.0
  %461 = vmatprep.subr.mxu0 0.0
  %462 = vmatpush2.msra.mxu0 0.0
  %463 = vmatprep.subr.mxu0 0.0
  %464 = vmatpush2.msra.mxu0 0.0
  %465 = vmatprep.subr.mxu0 0.0
  %466 = vmatpush2.msra.mxu0 0.0
  %467 = vmatprep.subr.mxu0 0.0
  %468 = vmatpush2.msra.mxu0 0.0
  %469 = vmatprep.subr.mxu0 0.0
  %470 = vmatpush2.msra.mxu0 0.0
  %471 = vmatprep.subr.mxu0 0.0
  %472 = vmatpush2.msra.mxu0 0.0
  %473 = vmatprep.subr.mxu0 0.0
  %474 = vmatpush2.msra.mxu0 0.0
  %475 = vmatprep.subr.mxu0 0.0
  %476 = vmatpush2.msra.mxu0 0.0
  %477 = vmatprep.subr.mxu0 0.0
  %478 = vmatpush2.msra.mxu0 0.0
  %479 = vmatprep.subr.mxu0 0.0
  %480 = vmatpush2.msra.mxu0 0.0
  %481 = vmatprep.subr.mxu0 0.0
  %482 = vmatpush2.msra.mxu0 0.0
  %483 = vmatprep.subr.mxu0 0.0
  %484 = vmatpush2.msra.mxu0 %v419
  %485 = vmatprep.mubr.f32.mxu0 %v306
  %486 = vmatmul.mubr.f32.gmra.mxu0 %v400
  %v487 = vpop.f32.mrf.mxu0
  %v488 = vadd.f32 0.0, %v487
  %v489 = vpop.f32.mrf.mxu0
  %490 = vdwg.mxu0
  %v491 = vmax.f32 %v488, 0.0
  %v492 = vld [vmem:[%s3] sm:$0xff]
  %v493 = vld [vmem:[%s3 + $0x8] sm:$0xff]
  %v494 = vld [vmem:[%s3 + $0x10] sm:$0xff]
  %v495 = vld [vmem:[%s3 + $0x18] sm:$0xff]
  %v496 = vld [vmem:[%s4] sm:$0x1]
  %v498 = vlaneseq
  %v499 = vshrl.u32 %v498, 7
  %v500 = vsub.s32 0, %v499
  %v501 = vrot.slane %v496, %v500
  %v504 = vsel %vm174, %v491, 0
  %506 = vmatprep.subr.mxu0 0.0
  %507 = vmatpush1.msra.mxu0 0.0
  %508 = vmatprep.subr.mxu0 0.0
  %509 = vmatpush1.msra.mxu0 0.0
  %510 = vmatprep.subr.mxu0 0.0
  %511 = vmatpush1.msra.mxu0 0.0
  %512 = vmatprep.subr.mxu0 0.0
  %513 = vmatpush1.msra.mxu0 0.0
  %514 = vmatprep.subr.mxu0 0.0
  %515 = vmatpush1.msra.mxu0 0.0
  %516 = vmatprep.subr.mxu0 0.0
  %517 = vmatpush1.msra.mxu0 0.0
  %518 = vmatprep.subr.mxu0 0.0
  %519 = vmatpush1.msra.mxu0 0.0
  %520 = vmatprep.subr.mxu0 0.0
  %521 = vmatpush1.msra.mxu0 0.0
  %522 = vmatprep.subr.mxu0 0.0
  %523 = vmatpush1.msra.mxu0 0.0
  %524 = vmatprep.subr.mxu0 0.0
  %525 = vmatpush1.msra.mxu0 0.0
  %526 = vmatprep.subr.mxu0 0.0
  %527 = vmatpush1.msra.mxu0 0.0
  %528 = vmatprep.subr.mxu0 0.0
  %529 = vmatpush1.msra.mxu0 0.0
  %530 = vmatprep.subr.mxu0 0.0
  %531 = vmatpush1.msra.mxu0 %v495
  %532 = vmatprep.subr.mxu0 0.0
  %533 = vmatpush1.msra.mxu0 %v494
  %534 = vmatprep.subr.mxu0 0.0
  %535 = vmatpush1.msra.mxu0 %v493
  %536 = vmatprep.subr.mxu0 0.0
  %537 = vmatpush1.msra.mxu0 %v492
  %538 = vmatprep.subr.mxu0 0.0
  %539 = vmatpush2.msra.mxu0 0.0
  %540 = vmatprep.subr.mxu0 0.0
  %541 = vmatpush2.msra.mxu0 0.0
  %542 = vmatprep.subr.mxu0 0.0
  %543 = vmatpush2.msra.mxu0 0.0
  %544 = vmatprep.subr.mxu0 0.0
  %545 = vmatpush2.msra.mxu0 0.0
  %546 = vmatprep.subr.mxu0 0.0
  %547 = vmatpush2.msra.mxu0 0.0
  %548 = vmatprep.subr.mxu0 0.0
  %549 = vmatpush2.msra.mxu0 0.0
  %550 = vmatprep.subr.mxu0 0.0
  %551 = vmatpush2.msra.mxu0 0.0
  %552 = vmatprep.subr.mxu0 0.0
  %553 = vmatpush2.msra.mxu0 0.0
  %554 = vmatprep.subr.mxu0 0.0
  %555 = vmatpush2.msra.mxu0 0.0
  %556 = vmatprep.subr.mxu0 0.0
  %557 = vmatpush2.msra.mxu0 0.0
  %558 = vmatprep.subr.mxu0 0.0
  %559 = vmatpush2.msra.mxu0 0.0
  %560 = vmatprep.subr.mxu0 0.0
  %561 = vmatpush2.msra.mxu0 0.0
  %562 = vmatprep.subr.mxu0 0.0
  %563 = vmatpush2.msra.mxu0 0.0
  %564 = vmatprep.subr.mxu0 0.0
  %565 = vmatpush2.msra.mxu0 0.0
  %566 = vmatprep.subr.mxu0 0.0
  %567 = vmatpush2.msra.mxu0 0.0
  %568 = vmatprep.subr.mxu0 0.0
  %569 = vmatpush2.msra.mxu0 0.0
  %570 = vmatprep.mubr.f32.mxu0 0.0
  %571 = vmatmul.mubr.f32.gmra.mxu0 %v504
  %v572 = vpop.f32.mrf.mxu0
  %v573 = vadd.f32 %v501, %v572
  %v574 = vpop.f32.mrf.mxu0
  %575 = vdwg.mxu0
  %v576 = vlaneseq
  %v577 = vand.u32 %v576, 127
  %vm578 = vcmp.ge.s32.totalorder %v577, 8
  %vm579 = vcmp.lt.s32.totalorder %v577, 16
  %vm580 = vmand %vm578, %vm579
  %v581 = vmax.f32 %v573, -20.0
  %v582 = vmin.f32 %v581, 10.0
  %v583 = vsel %vm580, %v582, %v573
  %584 = vst [vmem:[%s5] sm:$0xff] %v583
  // Predicated region
  $region22: #{pmlp_actor_forward.1} parent=0 // pred_check
    _
  $region23: #{pmlp_actor_forward.1} parent=0 // pred_check_branch
    %586 = sbr.rel (0) target = $region25
  $region24: #{pmlp_actor_forward.1} parent=0 // pred_region
    _
  $region25: #{pmlp_actor_forward.1} parent=0 // pred_fallthru
    _
  // Predicated region
  $region26: #{pmlp_actor_forward.1} parent=0 // pred_check
    _
  $region27: #{pmlp_actor_forward.1} parent=0 // pred_check_branch
    %588 = sbr.rel (0) target = $region29
  $region28: #{pmlp_actor_forward.1} parent=0 // pred_region
    _
  $region29: #{pmlp_actor_forward.1} parent=0 // pred_fallthru
    _

</llo_original>
